<compile_context>
chip_gen: v7x
topology: tpu7x:2x2x1
jax: 0.10.0
libtpu: 0.0.40
codegen_flags: <defaults>
</compile_context>

<pallas_src>
import functools

import jax
import jax.numpy as jnp
from jax.experimental import pallas as pl
from jax.experimental.pallas import tpu as pltpu


# ---------------------------------------------------------------------------
# Kernels
# ---------------------------------------------------------------------------

def transform_kernel(dinv_ref, x_ref, w_ref, hw_ref):
    """Per-node feature transform: hw = ((dinv * x) @ W), bf16 MXU, f32 accumulate."""
    xb = (dinv_ref[...] * x_ref[...].astype(jnp.float32)).astype(jnp.bfloat16)
    hw_ref[...] = jnp.dot(xb, w_ref[...],
                          preferred_element_type=jnp.float32).astype(jnp.bfloat16)


def aggregate_kernel(adj_ref, hw_ref, dinv_ref, b_ref, out_ref, acc_ref):
    """Neighborhood aggregation: out = relu(dinv * (A_hat @ hw) + b).

    Grid = (row blocks [parallel], contraction blocks [arbitrary]); the adjacency is
    streamed as (tm, tk) bf16 tiles and accumulated into an f32 VMEM scratch.
    """
    k = pl.program_id(1)

    @pl.when(k == 0)
    def _():
        acc_ref[...] = jnp.zeros_like(acc_ref)

    acc_ref[...] += jnp.dot(adj_ref[...], hw_ref[...],
                            preferred_element_type=jnp.float32)

    @pl.when(k == pl.num_programs(1) - 1)
    def _():
        out_ref[...] = jnp.maximum(dinv_ref[...] * acc_ref[...] + b_ref[...],
                                   0.0).astype(out_ref.dtype)


def head_kernel(pool_ref, h_ref, invc_ref, wl1_ref, bl1_ref, wl2_ref, bl2_ref,
                out_ref, g_ref):
    """global_mean_pool -> lin1 -> relu -> lin2.

    Pooling is a bf16 one-hot matmul accumulated in f32, then an f32 1/count rescale.
    lin2 (output width 1) is a VPU multiply + lane reduction instead of a 1-col MXU op.
    The logit is broadcast across 128 lanes so the store is an unmasked, lane-dense vst.
    """
    k = pl.program_id(0)

    @pl.when(k == 0)
    def _():
        g_ref[...] = jnp.zeros_like(g_ref)

    g_ref[...] += jnp.dot(pool_ref[...], h_ref[...],
                          preferred_element_type=jnp.float32)

    @pl.when(k == pl.num_programs(0) - 1)
    def _():
        g = g_ref[...] * invc_ref[...]                          # mean pool (f32 rescale)
        g = jnp.dot(g.astype(jnp.bfloat16), wl1_ref[...],
                    preferred_element_type=jnp.float32)
        g = jnp.maximum(g + bl1_ref[...], 0.0)                  # lin1 + relu (f32 tail)
        logit = jnp.sum(g * wl2_ref[...], axis=-1, keepdims=True) + bl2_ref[0, 0]
        out_ref[...] = jnp.broadcast_to(logit, out_ref.shape)


# ---------------------------------------------------------------------------
# Helpers
# ---------------------------------------------------------------------------

def _round_up(v, m):
    return ((v + m - 1) // m) * m


def _pad2(a, rows, cols):
    return jnp.pad(a, ((0, rows - a.shape[0]), (0, cols - a.shape[1])))


def _pick_tile(n, prefs):
    for p in prefs:
        if n % p == 0:
            return p
    return n


@functools.lru_cache(maxsize=1)
def _vmem_limit_bytes():
    """Per-generation VMEM budget: ~100 MiB on 128-MiB v5e/v6e, ~40 MiB on 64-MiB v7x."""
    cap = 64 * 1024 * 1024
    try:
        cap = int(pltpu.get_tpu_info().vmem_capacity_bytes)
    except Exception:
        pass
    if cap >= 128 * 1024 * 1024:
        return 100 * 1024 * 1024
    return min(40 * 1024 * 1024, int(cap * 3 // 4))


def build_graph(edge_index, batch, num_nodes, num_graphs):
    """Dense graph structure, built ONCE per graph and cached by the caller.

    Returns (adj_bf16 [Np,Np], dinv_f32 [Np,1], pool_onehot_bf16 [Gp,Np], inv_counts_f32 [Gp,1]).
    Self-loops are fused into the edge list so the adjacency is built with a single scatter
    directly in bf16 (0/1/small-integer values are exact in bf16).  Padded nodes have zero
    adjacency rows/cols, dinv = 0 and belong to no graph, so they never affect real outputs.
    """
    np_pad = max(128, _round_up(num_nodes, 128))      # lane/contraction-tile padded N
    gp = max(16, _round_up(num_graphs, 16))           # sublane-padded graph count

    src, dst = edge_index[0], edge_index[1]
    loops = jnp.arange(num_nodes, dtype=src.dtype)
    src_all = jnp.concatenate([src, loops])
    dst_all = jnp.concatenate([dst, loops])

    adj = jnp.zeros((np_pad, np_pad), jnp.bfloat16)
    adj = adj.at[dst_all, src_all].add(jnp.ones(dst_all.shape, jnp.bfloat16))

    deg = jnp.zeros((np_pad,), jnp.float32).at[dst_all].add(1.0)
    dinv = jnp.where(deg > 0.0, jax.lax.rsqrt(jnp.maximum(deg, 1.0)), 0.0)[:, None]

    batch_p = jnp.concatenate(
        [batch.astype(jnp.int32), jnp.full((np_pad - num_nodes,), -1, jnp.int32)])
    member = jnp.arange(gp, dtype=jnp.int32)[:, None] == batch_p[None, :]   # [Gp, Np]
    pool = member.astype(jnp.bfloat16)
    counts = member.sum(axis=1).astype(jnp.float32)
    inv_counts = (1.0 / jnp.maximum(counts, 1.0))[:, None]                  # [Gp, 1]
    return adj, dinv, pool, inv_counts


def _gcn_conv(x_in, adj, dinv, w, b, *, tm, tk, vmem_limit):
    """One GCNConv layer: relu(D^-1/2 (A+I) D^-1/2 X W + b), as two tiled kernels."""
    np_pad = adj.shape[0]
    c_in = x_in.shape[1]
    hp = w.shape[1]

    # Per-node transform: hw = (dinv * x_in) @ W                [Np, Hp] bf16
    hw = pl.pallas_call(
        transform_kernel,
        out_shape=jax.ShapeDtypeStruct((np_pad, hp), jnp.bfloat16),
        grid=(np_pad // tm,),
        in_specs=[pl.BlockSpec((tm, 1), lambda i: (i, 0)),
                  pl.BlockSpec((tm, c_in), lambda i: (i, 0)),
                  pl.BlockSpec((c_in, hp), lambda i: (0, 0))],
        out_specs=pl.BlockSpec((tm, hp), lambda i: (i, 0)),
        compiler_params=pltpu.CompilerParams(
            dimension_semantics=("parallel",),
            vmem_limit_bytes=vmem_limit),
    )(dinv, x_in, w)

    # Aggregation: relu(dinv * (A_hat @ hw) + b)                [Np, Hp] bf16
    out = pl.pallas_call(
        aggregate_kernel,
        out_shape=jax.ShapeDtypeStruct((np_pad, hp), jnp.bfloat16),
        grid=(np_pad // tm, np_pad // tk),
        in_specs=[pl.BlockSpec((tm, tk), lambda i, k: (i, k)),
                  pl.BlockSpec((tk, hp), lambda i, k: (k, 0)),
                  pl.BlockSpec((tm, 1), lambda i, k: (i, 0)),
                  pl.BlockSpec((1, hp), lambda i, k: (0, 0))],
        out_specs=pl.BlockSpec((tm, hp), lambda i, k: (i, 0)),
        scratch_shapes=[pltpu.VMEM((tm, hp), jnp.float32)],
        compiler_params=pltpu.CompilerParams(
            dimension_semantics=("parallel", "arbitrary"),
            vmem_limit_bytes=vmem_limit),
    )(adj, hw, dinv, b)
    return out


def gcn_forward(x, graph, params, num_graphs):
    """Forward pass of GCNModel. `graph` is the cached result of build_graph()."""
    adj, dinv, pool, inv_counts = graph
    np_pad = adj.shape[0]
    gp = pool.shape[0]

    hidden = params["w1"].shape[1]
    h_half = params["wl1"].shape[1]
    cp = _round_up(params["w1"].shape[0], 16)        # bf16 sublane-tile padded C_in
    hp = _round_up(hidden, 128)                      # lane-padded hidden channels
    hp2 = _round_up(h_half, 128)

    vmem_limit = _vmem_limit_bytes()
    tm = _pick_tile(np_pad, (256, 128))              # adjacency row tile (parallel axis)
    tk = _pick_tile(np_pad, (512, 256, 128))         # contraction tile (>=512 keeps the
                                                     # f32 bias/relu tail hidden on v5e)

    # --- pad node features and parameters (zero padding is numerically exact) ---
    x_p = _pad2(x.astype(jnp.float32), np_pad, cp)
    w1p = _pad2(params["w1"], cp, hp).astype(jnp.bfloat16)
    w2p = _pad2(params["w2"], hp, hp).astype(jnp.bfloat16)
    wl1p = _pad2(params["wl1"], hp, hp2).astype(jnp.bfloat16)
    wl2row = _pad2(params["wl2"].T, 1, hp2).astype(jnp.float32)
    b1p = _pad2(params["b1"], 1, hp).astype(jnp.float32)
    b2p = _pad2(params["b2"], 1, hp).astype(jnp.float32)
    bl1p = _pad2(params["bl1"], 1, hp2).astype(jnp.float32)
    bl2 = params["bl2"].reshape(1, 1).astype(jnp.float32)     # scalar -> SMEM

    # --- conv1, conv2 (tiled adjacency streaming, f32 accumulate, fused relu) ---
    h1 = _gcn_conv(x_p, adj, dinv, w1p, b1p, tm=tm, tk=tk, vmem_limit=vmem_limit)
    h2 = _gcn_conv(h1, adj, dinv, w2p, b2p, tm=tm, tk=tk, vmem_limit=vmem_limit)

    # --- global_mean_pool + lin1 + relu + lin2 ---
    out = pl.pallas_call(
        head_kernel,
        out_shape=jax.ShapeDtypeStruct((gp, 128), jnp.float32),
        grid=(np_pad // tk,),
        in_specs=[pl.BlockSpec((gp, tk), lambda k: (0, k)),
                  pl.BlockSpec((tk, hp), lambda k: (k, 0)),
                  pl.BlockSpec((gp, 1), lambda k: (0, 0)),
                  pl.BlockSpec((hp, hp2), lambda k: (0, 0)),
                  pl.BlockSpec((1, hp2), lambda k: (0, 0)),
                  pl.BlockSpec((1, hp2), lambda k: (0, 0)),
                  pl.BlockSpec(memory_space=pltpu.MemorySpace.SMEM)],
        out_specs=pl.BlockSpec((gp, 128), lambda k: (0, 0)),
        scratch_shapes=[pltpu.VMEM((gp, hp), jnp.float32)],
        compiler_params=pltpu.CompilerParams(
            dimension_semantics=("arbitrary",),
            vmem_limit_bytes=vmem_limit),
    )(pool, h2, inv_counts, wl1p, bl1p, wl2row, bl2)

    # Logit was broadcast across lanes; take column 0 of the first num_graphs rows.
    return out[:num_graphs, 0:1]


def init_params(key, in_channels, hidden):
    ks = jax.random.split(key, 6)

    def glorot(k, shape):
        fan_in, fan_out = shape
        limit = (6.0 / (fan_in + fan_out)) ** 0.5
        return jax.random.uniform(k, shape, jnp.float32, -limit, limit)

    return {
        # GCNConv weights (applied as X @ W), biases kept 2-D [1, C]
        "w1": glorot(ks[0], (in_channels, hidden)),
        "b1": jnp.zeros((1, hidden), jnp.float32),
        "w2": glorot(ks[1], (hidden, hidden)),
        "b2": jnp.zeros((1, hidden), jnp.float32),
        # Linear layers
        "wl1": glorot(ks[2], (hidden, hidden // 2)),
        "bl1": jax.random.uniform(ks[3], (1, hidden // 2), jnp.float32, -0.1, 0.1),
        "wl2": glorot(ks[4], (hidden // 2, 1)),
        "bl2": jax.random.uniform(ks[5], (1, 1), jnp.float32, -0.1, 0.1),
    }


if __name__ == "__main__":
    key = jax.random.PRNGKey(0)
    kx, kp = jax.random.split(key)

    N, C_IN, HIDDEN, G = 16, 4, 32, 2          # 16 nodes, 2 graphs of 8 nodes
    x = jax.random.normal(kx, (N, C_IN), jnp.float32)

    # bidirectional ring within each graph of 8 nodes
    srcs, dsts = [], []
    for g in range(G):
        base = g * 8
        for i in range(8):
            s, d = base + i, base + (i + 1) % 8
            srcs += [s, d]
            dsts += [d, s]
    edge_index = jnp.array([srcs, dsts], jnp.int32)   # [2, E]
    batch = jnp.array([0] * 8 + [1] * 8, jnp.int32)   # node -> graph id

    params = init_params(kp, C_IN, HIDDEN)

    # Graph structure is built once (outside the per-forward path) and reused.
    graph = build_graph(edge_index, batch, N, G)
    graph = jax.tree_util.tree_map(jax.block_until_ready, graph)

    out = gcn_forward(x, graph, params, G)   # [G, 1]
    jax.block_until_ready(out)
    assert out.shape == (G, 1)
    assert bool(jnp.all(jnp.isfinite(out)))
    print("KERNEL_OK")
</pallas_src>

<mosaic_0001>
module attributes {stable_mosaic.version = 11 : i64} {
  func.func @transform_kernel(%arg0: i32, %arg1: memref<128x1xf32, #tpu.memory_space<vmem>>, %arg2: memref<128x16xf32, #tpu.memory_space<vmem>>, %arg3: memref<16x128xbf16, #tpu.memory_space<vmem>>, %arg4: memref<128x128xbf16, #tpu.memory_space<vmem>>) attributes {dimension_semantics = [#tpu.dimension_semantics<parallel>], iteration_bounds = array<i64: 1>, scalar_prefetch = 0 : i64, scratch_operands = 0 : i64, tpu.core_type = #tpu.core_type<tc>, window_params = [{transform_indices = @transform_0, window_bounds = array<i64: 128, 1>}, {transform_indices = @transform_1, window_bounds = array<i64: 128, 16>}, {pipeline_mode = #tpu.pipeline_mode<synchronous>, transform_indices = @transform_2, window_bounds = array<i64: 16, 128>}, {transform_indices = @transform_3, window_bounds = array<i64: 128, 128>}]} {
    %c0 = arith.constant 0 : index
    %c0_0 = arith.constant 0 : index
    %0 = vector.load %arg1[%c0, %c0_0] : memref<128x1xf32, #tpu.memory_space<vmem>>, vector<128x1xf32>
    %c0_1 = arith.constant 0 : index
    %c0_2 = arith.constant 0 : index
    %1 = vector.load %arg2[%c0_1, %c0_2] : memref<128x16xf32, #tpu.memory_space<vmem>>, vector<128x16xf32>
    %2 = vector.broadcast %0 : vector<128x1xf32> to vector<128x16xf32>
    %3 = arith.mulf %2, %1 : vector<128x16xf32>
    %4 = arith.truncf %3 : vector<128x16xf32> to vector<128x16xbf16>
    %c0_3 = arith.constant 0 : index
    %c0_4 = arith.constant 0 : index
    %5 = vector.load %arg3[%c0_3, %c0_4] : memref<16x128xbf16, #tpu.memory_space<vmem>>, vector<16x128xbf16>
    %cst = arith.constant dense<0.000000e+00> : vector<128x128xf32>
    %6 = tpu.matmul %4, %5, %cst {dimension_numbers = #tpu.dot_dimension_numbers<[1], [0], [0], [1], [0, 0, 1, 1], [], []>} : vector<128x16xbf16>, vector<16x128xbf16>, vector<128x128xf32> -> vector<128x128xf32>
    %7 = arith.truncf %6 : vector<128x128xf32> to vector<128x128xbf16>
    %c0_5 = arith.constant 0 : index
    %c0_6 = arith.constant 0 : index
    %8 = vector.load %arg4[%c0_5, %c0_6] : memref<128x128xbf16, #tpu.memory_space<vmem>>, vector<128x128xbf16>
    tpu.vector_store %arg4[%c0_5, %c0_6], %7 {strides = array<i32>} : memref<128x128xbf16, #tpu.memory_space<vmem>>, vector<128x128xbf16>,
    return
  }
  func.func @transform_0(%arg0: i32) -> (i32, i32) {
    %c0_i32 = arith.constant 0 : i32
    %c0_i32_0 = arith.constant 0 : i32
    return %arg0, %c0_i32 : i32, i32
  }
  func.func @transform_1(%arg0: i32) -> (i32, i32) {
    %c0_i32 = arith.constant 0 : i32
    %c0_i32_0 = arith.constant 0 : i32
    return %arg0, %c0_i32 : i32, i32
  }
  func.func @transform_2(%arg0: i32) -> (i32, i32) {
    %c0_i32 = arith.constant 0 : i32
    %c0_i32_0 = arith.constant 0 : i32
    %c0_i32_1 = arith.constant 0 : i32
    return %c0_i32, %c0_i32_0 : i32, i32
  }
  func.func @transform_3(%arg0: i32) -> (i32, i32) {
    %c0_i32 = arith.constant 0 : i32
    %c0_i32_0 = arith.constant 0 : i32
    return %arg0, %c0_i32 : i32, i32
  }
}

</mosaic_0001>

<llo_original>
// kernel: tpu_custom_call.1
$region0: #{tpu_custom_call.1}
  #allocation0 [shape = 'u32[]', space=smem, size = 0x4, offset = 0x4, fixed_abs, tag = 'smem constant byte address 0x4 - core index']
  #allocation1 [shape = 'u32[144,128]{1,0:T(1,128)}', space=vmem, size = 0x12000, scoped, tag = 'internal scratch']
  %s0 = inlined_call_operand.vmem [shape: f32[128,1], index: 0, kind: input, shape index: {}]
  %s1 = inlined_call_operand.vmem [shape: f32[128,16], index: 1, kind: input, shape index: {}]
  %s2 = inlined_call_operand.vmem [shape: bf16[16,128], index: 2, kind: input, shape index: {}]
  %s3 = inlined_call_operand.hbm [shape: bf16[128,128], index: 3, kind: output, shape index: {}]
  %s4 = sld [smem:[#allocation0]]
  $region22: #{tpu_custom_call.1} parent=0
    _
  %s6 = ssub.s32 1, %s4
  %s7 = scalar_select 0, %s6, %s4
  $region1: #{tpu_custom_call.1} parent=0
    #allocation2 [shape = 'u8[32768]{0}', space=vmem, size = 0x8000, scoped, tag = 'output window, operand 0, single buffered']
    #allocation3 [shape = 's32[1]{0}', space=sflag, size = 0x4, scoped, tag = 'scoped memory for tpu_custom_call.1']
    %8 = vsyncpa [#allocation3], 0
    // Predicated region
    $region2: #{tpu_custom_call.1} parent=1 // pred_check
      _
    $region3: #{tpu_custom_call.1} parent=1 // pred_check_branch
      %10 = sbr.rel (0) target = $region5
    $region4: #{tpu_custom_call.1} parent=1 // pred_region
      _
    $region5: #{tpu_custom_call.1} parent=1 // pred_fallthru
      _
    // Predicated region
    $region6: #{tpu_custom_call.1} parent=1 // pred_check
      _
    $region7: #{tpu_custom_call.1} parent=1 // pred_check_branch
      %12 = sbr.rel (0) target = $region9
    $region8: #{tpu_custom_call.1} parent=1 // pred_region
      _
    $region9: #{tpu_custom_call.1} parent=1 // pred_fallthru
      _
    // Predicated region
    $region10: #{tpu_custom_call.1} parent=1 // pred_check
      _
    $region11: #{tpu_custom_call.1} parent=1 // pred_check_branch
      %14 = sbr.rel (0) target = $region13
    $region12: #{tpu_custom_call.1} parent=1 // pred_region
      _
    $region13: #{tpu_custom_call.1} parent=1 // pred_fallthru
      _
    %v16 = vld [vmem:[%s0] sm:$0xff]
    %v17 = vld [vmem:[%s0 + $0x8] sm:$0xff]
    %v18 = vld [vmem:[%s0 + $0x10] sm:$0xff]
    %v19 = vld [vmem:[%s0 + $0x18] sm:$0xff]
    %v20 = vld [vmem:[%s0 + $0x20] sm:$0xff]
    %v21 = vld [vmem:[%s0 + $0x28] sm:$0xff]
    %v22 = vld [vmem:[%s0 + $0x30] sm:$0xff]
    %v23 = vld [vmem:[%s0 + $0x38] sm:$0xff]
    %v24 = vld [vmem:[%s0 + $0x40] sm:$0xff]
    %v25 = vld [vmem:[%s0 + $0x48] sm:$0xff]
    %v26 = vld [vmem:[%s0 + $0x50] sm:$0xff]
    %v27 = vld [vmem:[%s0 + $0x58] sm:$0xff]
    %v28 = vld [vmem:[%s0 + $0x60] sm:$0xff]
    %v29 = vld [vmem:[%s0 + $0x68] sm:$0xff]
    %v30 = vld [vmem:[%s0 + $0x70] sm:$0xff]
    %v31 = vld [vmem:[%s0 + $0x78] sm:$0xff]
    %v32 = vld [vmem:[%s1] sm:$0xff]
    %v33 = vld [vmem:[%s1 + $0x8] sm:$0xff]
    %v34 = vld [vmem:[%s1 + $0x10] sm:$0xff]
    %v35 = vld [vmem:[%s1 + $0x18] sm:$0xff]
    %v36 = vld [vmem:[%s1 + $0x20] sm:$0xff]
    %v37 = vld [vmem:[%s1 + $0x28] sm:$0xff]
    %v38 = vld [vmem:[%s1 + $0x30] sm:$0xff]
    %v39 = vld [vmem:[%s1 + $0x38] sm:$0xff]
    %v40 = vld [vmem:[%s1 + $0x40] sm:$0xff]
    %v41 = vld [vmem:[%s1 + $0x48] sm:$0xff]
    %v42 = vld [vmem:[%s1 + $0x50] sm:$0xff]
    %v43 = vld [vmem:[%s1 + $0x58] sm:$0xff]
    %v44 = vld [vmem:[%s1 + $0x60] sm:$0xff]
    %v45 = vld [vmem:[%s1 + $0x68] sm:$0xff]
    %v46 = vld [vmem:[%s1 + $0x70] sm:$0xff]
    %v47 = vld [vmem:[%s1 + $0x78] sm:$0xff]
    %49 = vset.pattern.permute.xlu0 0
    %50 = vperm.xlu0 %49, %v16
    %v51 = vpop.permute.xlu0 %50
    %54 = vset.pattern.permute.xlu0 0
    %55 = vperm.xlu0 %54, %v17
    %v56 = vpop.permute.xlu0 %55
    %59 = vset.pattern.permute.xlu0 0
    %60 = vperm.xlu0 %59, %v18
    %v61 = vpop.permute.xlu0 %60
    %64 = vset.pattern.permute.xlu0 0
    %65 = vperm.xlu0 %64, %v19
    %v66 = vpop.permute.xlu0 %65
    %69 = vset.pattern.permute.xlu0 0
    %70 = vperm.xlu0 %69, %v20
    %v71 = vpop.permute.xlu0 %70
    %74 = vset.pattern.permute.xlu0 0
    %75 = vperm.xlu0 %74, %v21
    %v76 = vpop.permute.xlu0 %75
    %79 = vset.pattern.permute.xlu0 0
    %80 = vperm.xlu0 %79, %v22
    %v81 = vpop.permute.xlu0 %80
    %84 = vset.pattern.permute.xlu0 0
    %85 = vperm.xlu0 %84, %v23
    %v86 = vpop.permute.xlu0 %85
    %89 = vset.pattern.permute.xlu0 0
    %90 = vperm.xlu0 %89, %v24
    %v91 = vpop.permute.xlu0 %90
    %94 = vset.pattern.permute.xlu0 0
    %95 = vperm.xlu0 %94, %v25
    %v96 = vpop.permute.xlu0 %95
    %99 = vset.pattern.permute.xlu0 0
    %100 = vperm.xlu0 %99, %v26
    %v101 = vpop.permute.xlu0 %100
    %104 = vset.pattern.permute.xlu0 0
    %105 = vperm.xlu0 %104, %v27
    %v106 = vpop.permute.xlu0 %105
    %109 = vset.pattern.permute.xlu0 0
    %110 = vperm.xlu0 %109, %v28
    %v111 = vpop.permute.xlu0 %110
    %114 = vset.pattern.permute.xlu0 0
    %115 = vperm.xlu0 %114, %v29
    %v116 = vpop.permute.xlu0 %115
    %119 = vset.pattern.permute.xlu0 0
    %120 = vperm.xlu0 %119, %v30
    %v121 = vpop.permute.xlu0 %120
    %124 = vset.pattern.permute.xlu0 0
    %125 = vperm.xlu0 %124, %v31
    %v126 = vpop.permute.xlu0 %125
    %v128 = vmul.f32 %v51, %v32
    %v129 = vmul.f32 %v56, %v33
    %v130 = vmul.f32 %v61, %v34
    %v131 = vmul.f32 %v66, %v35
    %v132 = vmul.f32 %v71, %v36
    %v133 = vmul.f32 %v76, %v37
    %v134 = vmul.f32 %v81, %v38
    %v135 = vmul.f32 %v86, %v39
    %v136 = vmul.f32 %v91, %v40
    %v137 = vmul.f32 %v96, %v41
    %v138 = vmul.f32 %v101, %v42
    %v139 = vmul.f32 %v106, %v43
    %v140 = vmul.f32 %v111, %v44
    %v141 = vmul.f32 %v116, %v45
    %v142 = vmul.f32 %v121, %v46
    %v143 = vmul.f32 %v126, %v47
    %v144 = vpack.c.bf16 %v129, %v128
    %v145 = vpack.c.bf16 %v131, %v130
    %v146 = vpack.c.bf16 %v133, %v132
    %v147 = vpack.c.bf16 %v135, %v134
    %v148 = vpack.c.bf16 %v137, %v136
    %v149 = vpack.c.bf16 %v139, %v138
    %v150 = vpack.c.bf16 %v141, %v140
    %v151 = vpack.c.bf16 %v143, %v142
    %v152 = vld [vmem:[%s2] sm:$0xf]
    %v153 = vld [vmem:[%s2 + $0x4] sm:$0xf]
    %v156 = vunpack.c.l.b16 %v152
    %v157 = vunpack.c.l.b16 %v153
    %v158 = vpack.c.b16 %v157, %v156
    %vm160 = vcmask 130048
    %v162 = vsel %vm160, %v144, 0
    %v165 = vsel %vm160, %v145, 0
    %v168 = vsel %vm160, %v146, 0
    %v171 = vsel %vm160, %v147, 0
    %v174 = vsel %vm160, %v148, 0
    %v177 = vsel %vm160, %v149, 0
    %v180 = vsel %vm160, %v150, 0
    %v183 = vsel %vm160, %v151, 0
    %185 = vmatprep.subr.bf16.mxu0 0
    %186 = vmatpush1.bf16.msra.mxu0 %v158
    %187 = vmatprep.subr.bf16.mxu0 0
    %188 = vmatpush1.bf16.msra.mxu0 0
    %189 = vmatprep.subr.bf16.mxu0 0
    %190 = vmatpush1.bf16.msra.mxu0 0
    %191 = vmatprep.subr.bf16.mxu0 0
    %192 = vmatpush1.bf16.msra.mxu0 0
    %193 = vmatprep.subr.bf16.mxu0 0
    %194 = vmatpush1.bf16.msra.mxu0 0
    %195 = vmatprep.subr.bf16.mxu0 0
    %196 = vmatpush1.bf16.msra.mxu0 0
    %197 = vmatprep.subr.bf16.mxu0 0
    %198 = vmatpush1.bf16.msra.mxu0 0
    %199 = vmatprep.subr.bf16.mxu0 0
    %200 = vmatpush1.bf16.msra.mxu0 0
    %201 = vmatprep.subr.bf16.mxu0 0
    %202 = vmatpush1.bf16.msra.mxu0 0
    %203 = vmatprep.subr.bf16.mxu0 0
    %204 = vmatpush1.bf16.msra.mxu0 0
    %205 = vmatprep.subr.bf16.mxu0 0
    %206 = vmatpush1.bf16.msra.mxu0 0
    %207 = vmatprep.subr.bf16.mxu0 0
    %208 = vmatpush1.bf16.msra.mxu0 0
    %209 = vmatprep.subr.bf16.mxu0 0
    %210 = vmatpush1.bf16.msra.mxu0 0
    %211 = vmatprep.subr.bf16.mxu0 0
    %212 = vmatpush1.bf16.msra.mxu0 0
    %213 = vmatprep.subr.bf16.mxu0 0
    %214 = vmatpush1.bf16.msra.mxu0 0
    %215 = vmatprep.subr.bf16.mxu0 0
    %216 = vmatpush1.bf16.msra.mxu0 0
    %217 = vmatprep.mubr.bf16.mxu0 0
    %218 = vmatmul.mubr.bf16.gmra.mrb[0].mxu0 %v162
    %v219 = vpop.f32.mrb[0].mxu0
    %v220 = vadd.f32 0.0, %v219
    %v221 = vpop.f32.mrb[0].mxu0
    %v222 = vpop.f32.mrb[0].mxu0
    %v223 = vadd.f32 0.0, %v222
    %v224 = vpop.f32.mrb[0].mxu0
    %225 = vmatprep.mubr.bf16.mxu0 0
    %226 = vmatmul.mubr.bf16.gmra.mrb[0].mxu0 %v165
    %v227 = vpop.f32.mrb[0].mxu0
    %v228 = vadd.f32 0.0, %v227
    %v229 = vpop.f32.mrb[0].mxu0
    %v230 = vpop.f32.mrb[0].mxu0
    %v231 = vadd.f32 0.0, %v230
    %v232 = vpop.f32.mrb[0].mxu0
    %233 = vmatprep.mubr.bf16.mxu0 0
    %234 = vmatmul.mubr.bf16.gmra.mrb[0].mxu0 %v168
    %v235 = vpop.f32.mrb[0].mxu0
    %v236 = vadd.f32 0.0, %v235
    %v237 = vpop.f32.mrb[0].mxu0
    %v238 = vpop.f32.mrb[0].mxu0
    %v239 = vadd.f32 0.0, %v238
    %v240 = vpop.f32.mrb[0].mxu0
    %241 = vmatprep.mubr.bf16.mxu0 0
    %242 = vmatmul.mubr.bf16.gmra.mrb[0].mxu0 %v171
    %v243 = vpop.f32.mrb[0].mxu0
    %v244 = vadd.f32 0.0, %v243
    %v245 = vpop.f32.mrb[0].mxu0
    %v246 = vpop.f32.mrb[0].mxu0
    %v247 = vadd.f32 0.0, %v246
    %v248 = vpop.f32.mrb[0].mxu0
    %249 = vmatprep.mubr.bf16.mxu0 0
    %250 = vmatmul.mubr.bf16.gmra.mrb[0].mxu0 %v174
    %v251 = vpop.f32.mrb[0].mxu0
    %v252 = vadd.f32 0.0, %v251
    %v253 = vpop.f32.mrb[0].mxu0
    %v254 = vpop.f32.mrb[0].mxu0
    %v255 = vadd.f32 0.0, %v254
    %v256 = vpop.f32.mrb[0].mxu0
    %257 = vmatprep.mubr.bf16.mxu0 0
    %258 = vmatmul.mubr.bf16.gmra.mrb[0].mxu0 %v177
    %v259 = vpop.f32.mrb[0].mxu0
    %v260 = vadd.f32 0.0, %v259
    %v261 = vpop.f32.mrb[0].mxu0
    %v262 = vpop.f32.mrb[0].mxu0
    %v263 = vadd.f32 0.0, %v262
    %v264 = vpop.f32.mrb[0].mxu0
    %265 = vmatprep.mubr.bf16.mxu0 0
    %266 = vmatmul.mubr.bf16.gmra.mrb[0].mxu0 %v180
    %v267 = vpop.f32.mrb[0].mxu0
    %v268 = vadd.f32 0.0, %v267
    %v269 = vpop.f32.mrb[0].mxu0
    %v270 = vpop.f32.mrb[0].mxu0
    %v271 = vadd.f32 0.0, %v270
    %v272 = vpop.f32.mrb[0].mxu0
    %273 = vmatprep.mubr.bf16.mxu0 0
    %274 = vmatmul.mubr.bf16.gmra.mrb[0].mxu0 %v183
    %v275 = vpop.f32.mrb[0].mxu0
    %v276 = vadd.f32 0.0, %v275
    %v277 = vpop.f32.mrb[0].mxu0
    %v278 = vpop.f32.mrb[0].mxu0
    %v279 = vadd.f32 0.0, %v278
    %v280 = vpop.f32.mrb[0].mxu0
    %281 = vdwg.mxu0
    %v282 = vpack.c.bf16 %v223, %v220
    %v283 = vpack.c.bf16 %v231, %v228
    %v284 = vpack.c.bf16 %v239, %v236
    %v285 = vpack.c.bf16 %v247, %v244
    %v286 = vpack.c.bf16 %v255, %v252
    %v287 = vpack.c.bf16 %v263, %v260
    %v288 = vpack.c.bf16 %v271, %v268
    %v289 = vpack.c.bf16 %v279, %v276
    %v298 = vunpack.c.l.b16 %v282
    %v299 = vunpack.c.h.b16 %v282
    %v300 = vunpack.c.l.b16 %v283
    %v301 = vunpack.c.h.b16 %v283
    %v302 = vunpack.c.l.b16 %v284
    %v303 = vunpack.c.h.b16 %v284
    %v304 = vunpack.c.l.b16 %v285
    %v305 = vunpack.c.h.b16 %v285
    %v306 = vunpack.c.l.b16 %v286
    %v307 = vunpack.c.h.b16 %v286
    %v308 = vunpack.c.l.b16 %v287
    %v309 = vunpack.c.h.b16 %v287
    %v310 = vunpack.c.l.b16 %v288
    %v311 = vunpack.c.h.b16 %v288
    %v312 = vunpack.c.l.b16 %v289
    %v313 = vunpack.c.h.b16 %v289
    %v314 = vpack.c.b16 %v298, %v298
    %v315 = vpack.c.b16 %v299, %v299
    %v316 = vpack.c.b16 %v300, %v300
    %v317 = vpack.c.b16 %v301, %v301
    %v318 = vpack.c.b16 %v302, %v302
    %v319 = vpack.c.b16 %v303, %v303
    %v320 = vpack.c.b16 %v304, %v304
    %v321 = vpack.c.b16 %v305, %v305
    %v322 = vpack.c.b16 %v306, %v306
    %v323 = vpack.c.b16 %v307, %v307
    %v324 = vpack.c.b16 %v308, %v308
    %v325 = vpack.c.b16 %v309, %v309
    %v326 = vpack.c.b16 %v310, %v310
    %v327 = vpack.c.b16 %v311, %v311
    %v328 = vpack.c.b16 %v312, %v312
    %v329 = vpack.c.b16 %v313, %v313
    %346 = vst [vmem:[#allocation2] sm:$0xf] %v314
    %347 = vst [vmem:[#allocation2 + $0x4] sm:$0xf] %v315
    %348 = vst [vmem:[#allocation2 + $0x8] sm:$0xf] %v316
    %349 = vst [vmem:[#allocation2 + $0xc] sm:$0xf] %v317
    %350 = vst [vmem:[#allocation2 + $0x10] sm:$0xf] %v318
    %351 = vst [vmem:[#allocation2 + $0x14] sm:$0xf] %v319
    %352 = vst [vmem:[#allocation2 + $0x18] sm:$0xf] %v320
    %353 = vst [vmem:[#allocation2 + $0x1c] sm:$0xf] %v321
    %354 = vst [vmem:[#allocation2 + $0x20] sm:$0xf] %v322
    %355 = vst [vmem:[#allocation2 + $0x24] sm:$0xf] %v323
    %356 = vst [vmem:[#allocation2 + $0x28] sm:$0xf] %v324
    %357 = vst [vmem:[#allocation2 + $0x2c] sm:$0xf] %v325
    %358 = vst [vmem:[#allocation2 + $0x30] sm:$0xf] %v326
    %359 = vst [vmem:[#allocation2 + $0x34] sm:$0xf] %v327
    %360 = vst [vmem:[#allocation2 + $0x38] sm:$0xf] %v328
    %361 = vst [vmem:[#allocation2 + $0x3c] sm:$0xf] %v329
    // Predicated region
    $region14: #{tpu_custom_call.1} parent=1 // pred_check
      _
    $region15: #{tpu_custom_call.1} parent=1 // pred_check_branch
      %363 = sbr.rel (0) target = $region17
    $region16: #{tpu_custom_call.1} parent=1 // pred_region
      %s365 = ssub.s32 1024, 1024
      %366 = vsyncadd [#allocation3], %s365
      %s367 = sshll.u32 [#allocation2], 4
      %s368 = int_to_ptr.vmem [resolvable:$true] %s367
      %373 = dma.vmem_to_hbm [thread:$0]  %s368, 1024, %s3, [#allocation3], 64, 64, 4
    $region17: #{tpu_custom_call.1} parent=1 // pred_fallthru
      _
    // Predicated region
    $region18: #{tpu_custom_call.1} parent=1 // pred_check
      _
    $region19: #{tpu_custom_call.1} parent=1 // pred_check_branch
      %375 = sbr.rel (0) target = $region21
    $region20: #{tpu_custom_call.1} parent=1 // pred_region
      %376 = dma.done [#allocation3], 1024
    $region21: #{tpu_custom_call.1} parent=1 // pred_fallthru
      _
    %377 = vsyncpa [#allocation3], 1

</llo_original>
